<compile_context>
chip_gen: v6e
topology: v6e:2x2x1
jax: 0.10.0
libtpu: 0.0.40
codegen_flags: <defaults>
</compile_context>

<pallas_src>
import math
from functools import partial

import jax
import jax.numpy as jnp
from jax.experimental import pallas as pl
from jax.experimental.pallas import tpu as pltpu


def _attention_head_kernel(inv_scale, bt, sq, sk, din, compute_dtype,
                           q_ref, k_ref, v_ref,
                           wq_ref, bq_ref,
                           wk_ref, bk_ref,
                           wv_ref, bv_ref,
                           o_ref):
    # ---- Linear projections (MXU) ------------------------------------------
    # Flatten (Bt, S) -> rows so each projection is one big 2-D matmul
    # (one weight push per projection, better MXU sublane occupancy).
    xq = q_ref[...].reshape(bt * sq, din)
    xk = k_ref[...].reshape(bt * sk, din)
    xv = v_ref[...].reshape(bt * sk, din)

    q = jnp.dot(xq, wq_ref[...], preferred_element_type=jnp.float32) + bq_ref[...]
    k = jnp.dot(xk, wk_ref[...], preferred_element_type=jnp.float32) + bk_ref[...]
    v = jnp.dot(xv, wv_ref[...], preferred_element_type=jnp.float32) + bv_ref[...]

    # Fold the 1/sqrt(dim_q) scale into Q (Sq*Dq multiplies, not Sq*Sk).
    q = q * inv_scale

    dq = q.shape[-1]
    dk = v.shape[-1]
    q3 = q.reshape(bt, sq, dq).astype(compute_dtype)
    k3 = k.reshape(bt, sk, dq).astype(compute_dtype)
    v3 = v.reshape(bt, sk, dk).astype(compute_dtype)

    # ---- Scaled dot-product attention ---------------------------------------
    # Contract over the feature dim directly -> no explicit K^T materialization.
    scores = jnp.einsum('bqd,bkd->bqk', q3, k3,
                        preferred_element_type=jnp.float32)
    m = jnp.max(scores, axis=-1, keepdims=True)
    p = jnp.exp(scores - m)
    # EUP approximate reciprocal for the softmax denominator.
    p = p * pl.reciprocal(jnp.sum(p, axis=-1, keepdims=True), approx=True)

    out = jnp.einsum('bqk,bkd->bqd', p.astype(compute_dtype), v3,
                     preferred_element_type=jnp.float32)
    o_ref[...] = out.astype(o_ref.dtype)


def attention_head(query, key, value, params, *, block_b=None, compute_dtype=None):
    """query/key/value: (B, S, dim_in). params: dict of wq,bq,wk,bk,wv,bv.

    compute_dtype: dtype of MXU operands (e.g. jnp.bfloat16 on v6e/v7x);
    all matmuls accumulate in f32 and the output keeps query.dtype.
    """
    B, Sq, Din = query.shape
    Bk, Sk, Din_k = key.shape
    assert key.shape == value.shape and Bk == B and Din_k == Din
    Dq = params["wq"].shape[1]
    Dk = params["wk"].shape[1]
    assert params["wv"].shape[1] == Dk
    assert Dq == Dk, "Q.K^T requires dim_q == dim_k (same as torch.bmm)."
    inv_scale = 1.0 / math.sqrt(float(Dq))

    out_dtype = query.dtype
    cdt = compute_dtype if compute_dtype is not None else query.dtype

    cast = lambda x: x.astype(cdt)  # noqa: E731
    q_in, k_in, v_in = cast(query), cast(key), cast(value)
    wq, bq = cast(params["wq"]), cast(params["bq"])
    wk, bk = cast(params["wk"]), cast(params["bk"])
    wv, bv = cast(params["wv"]), cast(params["bv"])

    # Batch tile: process Bt batch rows per grid step to amortize per-step overhead.
    if block_b is None:
        block_b = 1
        for cand in (8, 4, 2, 1):
            if B % cand == 0:
                block_b = cand
                break
    assert B % block_b == 0, "block_b must divide the batch size"
    Bt = block_b

    kernel = partial(_attention_head_kernel, inv_scale, Bt, Sq, Sk, Din, cdt)
    const2 = lambda b: (0, 0)  # noqa: E731 (weights/biases: same block every step)

    return pl.pallas_call(
        kernel,
        out_shape=jax.ShapeDtypeStruct((B, Sq, Dk), out_dtype),
        grid=(B // Bt,),
        in_specs=[
            pl.BlockSpec((Bt, Sq, Din), lambda b: (b, 0, 0)),   # query
            pl.BlockSpec((Bt, Sk, Din), lambda b: (b, 0, 0)),   # key
            pl.BlockSpec((Bt, Sk, Din), lambda b: (b, 0, 0)),   # value
            pl.BlockSpec((Din, Dq), const2),                    # wq
            pl.BlockSpec((1, Dq), const2),                      # bq
            pl.BlockSpec((Din, Dk), const2),                    # wk
            pl.BlockSpec((1, Dk), const2),                      # bk
            pl.BlockSpec((Din, Dk), const2),                    # wv
            pl.BlockSpec((1, Dk), const2),                      # bv
        ],
        out_specs=pl.BlockSpec((Bt, Sq, Dk), lambda b: (b, 0, 0)),
        compiler_params=pltpu.CompilerParams(
            dimension_semantics=("parallel",),
            vmem_limit_bytes=32 * 1024 * 1024,
        ),
    )(q_in, k_in, v_in, wq, bq, wk, bk, wv, bv)


def _reference(query, key, value, params):
    Q = query @ params["wq"] + params["bq"]
    K = key @ params["wk"] + params["bk"]
    V = value @ params["wv"] + params["bv"]
    scale = Q.shape[-1] ** 0.5
    scores = jnp.einsum("bqd,bkd->bqk", Q, K) / scale
    p = jax.nn.softmax(scores, axis=-1)
    return jnp.einsum("bqk,bkd->bqd", p, V)


if __name__ == "__main__":
    # Small shapes consistent with AttentionHead(dim_in, dim_q, dim_k).
    B, Sq, Sk = 4, 8, 8
    dim_in, dim_q, dim_k = 32, 16, 16

    key0 = jax.random.PRNGKey(0)
    ks = jax.random.split(key0, 9)

    query = jax.random.normal(ks[0], (B, Sq, dim_in), dtype=jnp.float32)
    key_t = jax.random.normal(ks[1], (B, Sk, dim_in), dtype=jnp.float32)
    value = jax.random.normal(ks[2], (B, Sk, dim_in), dtype=jnp.float32)

    # Deterministic nn.Linear-like uniform init, stored as (in, out).
    bound = 1.0 / math.sqrt(dim_in)
    params = {
        "wq": jax.random.uniform(ks[3], (dim_in, dim_q), jnp.float32, -bound, bound),
        "bq": jax.random.uniform(ks[4], (1, dim_q), jnp.float32, -bound, bound),
        "wk": jax.random.uniform(ks[5], (dim_in, dim_k), jnp.float32, -bound, bound),
        "bk": jax.random.uniform(ks[6], (1, dim_k), jnp.float32, -bound, bound),
        "wv": jax.random.uniform(ks[7], (dim_in, dim_k), jnp.float32, -bound, bound),
        "bv": jax.random.uniform(ks[8], (1, dim_k), jnp.float32, -bound, bound),
    }

    ref = _reference(query, key_t, value, params)

    # f32 operand path (2 batch rows per grid step -> grid of 2 steps).
    out_f32 = attention_head(query, key_t, value, params, block_b=2)
    out_f32 = jax.block_until_ready(out_f32)
    assert out_f32.shape == (B, Sq, dim_k)
    # Tolerance accounts for the EUP approximate reciprocal in the softmax.
    assert jnp.allclose(out_f32, ref, atol=1e-2, rtol=1e-2), "f32 path mismatch vs reference"

    # bf16 operand path (f32 accumulation) — native MXU path on v6e/v7x.
    out_bf16 = attention_head(query, key_t, value, params, compute_dtype=jnp.bfloat16)
    out_bf16 = jax.block_until_ready(out_bf16)
    assert out_bf16.shape == (B, Sq, dim_k)
    assert jnp.allclose(out_bf16, ref, atol=5e-2, rtol=5e-2), "bf16 path mismatch vs reference"

    print("KERNEL_OK")
</pallas_src>

<mosaic_0001>
module attributes {stable_mosaic.version = 11 : i64} {
  func.func @_attention_head_kernel(%arg0: i32, %arg1: memref<2x8x32xf32, #tpu.memory_space<vmem>>, %arg2: memref<2x8x32xf32, #tpu.memory_space<vmem>>, %arg3: memref<2x8x32xf32, #tpu.memory_space<vmem>>, %arg4: memref<32x16xf32, #tpu.memory_space<vmem>>, %arg5: memref<1x16xf32, #tpu.memory_space<vmem>>, %arg6: memref<32x16xf32, #tpu.memory_space<vmem>>, %arg7: memref<1x16xf32, #tpu.memory_space<vmem>>, %arg8: memref<32x16xf32, #tpu.memory_space<vmem>>, %arg9: memref<1x16xf32, #tpu.memory_space<vmem>>, %arg10: memref<2x8x16xf32, #tpu.memory_space<vmem>>) attributes {dimension_semantics = [#tpu.dimension_semantics<parallel>], iteration_bounds = array<i64: 2>, scalar_prefetch = 0 : i64, scratch_operands = 0 : i64, tpu.core_type = #tpu.core_type<tc>, window_params = [{transform_indices = @transform_0, window_bounds = array<i64: 2, 8, 32>}, {transform_indices = @transform_1, window_bounds = array<i64: 2, 8, 32>}, {transform_indices = @transform_2, window_bounds = array<i64: 2, 8, 32>}, {pipeline_mode = #tpu.pipeline_mode<synchronous>, transform_indices = @transform_3, window_bounds = array<i64: 32, 16>}, {pipeline_mode = #tpu.pipeline_mode<synchronous>, transform_indices = @transform_4, window_bounds = array<i64: 1, 16>}, {pipeline_mode = #tpu.pipeline_mode<synchronous>, transform_indices = @transform_5, window_bounds = array<i64: 32, 16>}, {pipeline_mode = #tpu.pipeline_mode<synchronous>, transform_indices = @transform_6, window_bounds = array<i64: 1, 16>}, {pipeline_mode = #tpu.pipeline_mode<synchronous>, transform_indices = @transform_7, window_bounds = array<i64: 32, 16>}, {pipeline_mode = #tpu.pipeline_mode<synchronous>, transform_indices = @transform_8, window_bounds = array<i64: 1, 16>}, {transform_indices = @transform_9, window_bounds = array<i64: 2, 8, 16>}]} {
    %c0 = arith.constant 0 : index
    %c0_0 = arith.constant 0 : index
    %c0_1 = arith.constant 0 : index
    %0 = vector.load %arg1[%c0, %c0_0, %c0_1] : memref<2x8x32xf32, #tpu.memory_space<vmem>>, vector<2x8x32xf32>
    %1 = vector.shape_cast %0 : vector<2x8x32xf32> to vector<16x32xf32>
    %c0_2 = arith.constant 0 : index
    %c0_3 = arith.constant 0 : index
    %c0_4 = arith.constant 0 : index
    %2 = vector.load %arg2[%c0_2, %c0_3, %c0_4] : memref<2x8x32xf32, #tpu.memory_space<vmem>>, vector<2x8x32xf32>
    %3 = vector.shape_cast %2 : vector<2x8x32xf32> to vector<16x32xf32>
    %c0_5 = arith.constant 0 : index
    %c0_6 = arith.constant 0 : index
    %c0_7 = arith.constant 0 : index
    %4 = vector.load %arg3[%c0_5, %c0_6, %c0_7] : memref<2x8x32xf32, #tpu.memory_space<vmem>>, vector<2x8x32xf32>
    %5 = vector.shape_cast %4 : vector<2x8x32xf32> to vector<16x32xf32>
    %c0_8 = arith.constant 0 : index
    %c0_9 = arith.constant 0 : index
    %6 = vector.load %arg4[%c0_8, %c0_9] : memref<32x16xf32, #tpu.memory_space<vmem>>, vector<32x16xf32>
    %cst = arith.constant dense<0.000000e+00> : vector<16x16xf32>
    %7 = tpu.matmul %1, %6, %cst {dimension_numbers = #tpu.dot_dimension_numbers<[1], [0], [0], [1], [0, 0, 1, 1], [], []>} : vector<16x32xf32>, vector<32x16xf32>, vector<16x16xf32> -> vector<16x16xf32>
    %c0_10 = arith.constant 0 : index
    %c0_11 = arith.constant 0 : index
    %8 = vector.load %arg5[%c0_10, %c0_11] : memref<1x16xf32, #tpu.memory_space<vmem>>, vector<1x16xf32>
    %9 = vector.broadcast %8 : vector<1x16xf32> to vector<16x16xf32>
    %10 = arith.addf %7, %9 : vector<16x16xf32>
    %c0_12 = arith.constant 0 : index
    %c0_13 = arith.constant 0 : index
    %11 = vector.load %arg6[%c0_12, %c0_13] : memref<32x16xf32, #tpu.memory_space<vmem>>, vector<32x16xf32>
    %cst_14 = arith.constant dense<0.000000e+00> : vector<16x16xf32>
    %12 = tpu.matmul %3, %11, %cst_14 {dimension_numbers = #tpu.dot_dimension_numbers<[1], [0], [0], [1], [0, 0, 1, 1], [], []>} : vector<16x32xf32>, vector<32x16xf32>, vector<16x16xf32> -> vector<16x16xf32>
    %c0_15 = arith.constant 0 : index
    %c0_16 = arith.constant 0 : index
    %13 = vector.load %arg7[%c0_15, %c0_16] : memref<1x16xf32, #tpu.memory_space<vmem>>, vector<1x16xf32>
    %14 = vector.broadcast %13 : vector<1x16xf32> to vector<16x16xf32>
    %15 = arith.addf %12, %14 : vector<16x16xf32>
    %c0_17 = arith.constant 0 : index
    %c0_18 = arith.constant 0 : index
    %16 = vector.load %arg8[%c0_17, %c0_18] : memref<32x16xf32, #tpu.memory_space<vmem>>, vector<32x16xf32>
    %cst_19 = arith.constant dense<0.000000e+00> : vector<16x16xf32>
    %17 = tpu.matmul %5, %16, %cst_19 {dimension_numbers = #tpu.dot_dimension_numbers<[1], [0], [0], [1], [0, 0, 1, 1], [], []>} : vector<16x32xf32>, vector<32x16xf32>, vector<16x16xf32> -> vector<16x16xf32>
    %c0_20 = arith.constant 0 : index
    %c0_21 = arith.constant 0 : index
    %18 = vector.load %arg9[%c0_20, %c0_21] : memref<1x16xf32, #tpu.memory_space<vmem>>, vector<1x16xf32>
    %19 = vector.broadcast %18 : vector<1x16xf32> to vector<16x16xf32>
    %20 = arith.addf %17, %19 : vector<16x16xf32>
    %cst_22 = arith.constant 2.500000e-01 : f32
    %21 = vector.broadcast %cst_22 : f32 to vector<16x16xf32>
    %22 = arith.mulf %10, %21 : vector<16x16xf32>
    %23 = vector.shape_cast %22 : vector<16x16xf32> to vector<2x8x16xf32>
    %24 = vector.shape_cast %15 : vector<16x16xf32> to vector<2x8x16xf32>
    %25 = vector.shape_cast %20 : vector<16x16xf32> to vector<2x8x16xf32>
    "tpu.trace_start"() <{level = 10 : i32, message = "bqd,bkd->bqk"}> : () -> ()
    %cst_23 = arith.constant dense<0.000000e+00> : vector<2x8x8xf32>
    %26 = tpu.matmul %23, %24, %cst_23 {dimension_numbers = #tpu.dot_dimension_numbers<[2], [2], [1], [1], [0, 0, 0, 1, 1, 1], [0], [0]>} : vector<2x8x16xf32>, vector<2x8x16xf32>, vector<2x8x8xf32> -> vector<2x8x8xf32>
    "tpu.trace_stop"() : () -> ()
    %cst_24 = arith.constant dense<0xFF800000> : vector<2x8xf32>
    %27 = vector.multi_reduction <maximumf>, %26, %cst_24 [2] : vector<2x8x8xf32> to vector<2x8xf32>
    %28 = vector.shape_cast %27 : vector<2x8xf32> to vector<2x8x1xf32>
    %29 = vector.broadcast %28 : vector<2x8x1xf32> to vector<2x8x8xf32>
    %30 = arith.subf %26, %29 : vector<2x8x8xf32>
    %31 = math.exp %30 : vector<2x8x8xf32>
    %cst_25 = arith.constant dense<0.000000e+00> : vector<2x8xf32>
    %32 = vector.multi_reduction <add>, %31, %cst_25 [2] : vector<2x8x8xf32> to vector<2x8xf32>
    %33 = vector.shape_cast %32 : vector<2x8xf32> to vector<2x8x1xf32>
    %34 = tpu.reciprocal %33 {approx = true} : vector<2x8x1xf32> -> vector<2x8x1xf32>
    %35 = vector.broadcast %34 : vector<2x8x1xf32> to vector<2x8x8xf32>
    %36 = arith.mulf %31, %35 : vector<2x8x8xf32>
    "tpu.trace_start"() <{level = 10 : i32, message = "bqk,bkd->bqd"}> : () -> ()
    %cst_26 = arith.constant dense<0.000000e+00> : vector<2x8x16xf32>
    %37 = tpu.matmul %36, %25, %cst_26 {dimension_numbers = #tpu.dot_dimension_numbers<[2], [1], [1], [2], [0, 0, 0, 1, 1, 2], [0], [0]>} : vector<2x8x8xf32>, vector<2x8x16xf32>, vector<2x8x16xf32> -> vector<2x8x16xf32>
    "tpu.trace_stop"() : () -> ()
    %c0_27 = arith.constant 0 : index
    %c0_28 = arith.constant 0 : index
    %c0_29 = arith.constant 0 : index
    %38 = vector.load %arg10[%c0_27, %c0_28, %c0_29] : memref<2x8x16xf32, #tpu.memory_space<vmem>>, vector<2x8x16xf32>
    tpu.vector_store %arg10[%c0_27, %c0_28, %c0_29], %37 {strides = array<i32>} : memref<2x8x16xf32, #tpu.memory_space<vmem>>, vector<2x8x16xf32>,
    return
  }
  func.func @transform_0(%arg0: i32) -> (i32, i32, i32) {
    %c0_i32 = arith.constant 0 : i32
    %c0_i32_0 = arith.constant 0 : i32
    %c0_i32_1 = arith.constant 0 : i32
    return %arg0, %c0_i32, %c0_i32_0 : i32, i32, i32
  }
  func.func @transform_1(%arg0: i32) -> (i32, i32, i32) {
    %c0_i32 = arith.constant 0 : i32
    %c0_i32_0 = arith.constant 0 : i32
    %c0_i32_1 = arith.constant 0 : i32
    return %arg0, %c0_i32, %c0_i32_0 : i32, i32, i32
  }
  func.func @transform_2(%arg0: i32) -> (i32, i32, i32) {
    %c0_i32 = arith.constant 0 : i32
    %c0_i32_0 = arith.constant 0 : i32
    %c0_i32_1 = arith.constant 0 : i32
    return %arg0, %c0_i32, %c0_i32_0 : i32, i32, i32
  }
  func.func @transform_3(%arg0: i32) -> (i32, i32) {
    %c0_i32 = arith.constant 0 : i32
    %c0_i32_0 = arith.constant 0 : i32
    %c0_i32_1 = arith.constant 0 : i32
    return %c0_i32, %c0_i32_0 : i32, i32
  }
  func.func @transform_4(%arg0: i32) -> (i32, i32) {
    %c0_i32 = arith.constant 0 : i32
    %c0_i32_0 = arith.constant 0 : i32
    %c0_i32_1 = arith.constant 0 : i32
    return %c0_i32, %c0_i32_0 : i32, i32
  }
  func.func @transform_5(%arg0: i32) -> (i32, i32) {
    %c0_i32 = arith.constant 0 : i32
    %c0_i32_0 = arith.constant 0 : i32
    %c0_i32_1 = arith.constant 0 : i32
    return %c0_i32, %c0_i32_0 : i32, i32
  }
  func.func @transform_6(%arg0: i32) -> (i32, i32) {
    %c0_i32 = arith.constant 0 : i32
    %c0_i32_0 = arith.constant 0 : i32
    %c0_i32_1 = arith.constant 0 : i32
    return %c0_i32, %c0_i32_0 : i32, i32
  }
  func.func @transform_7(%arg0: i32) -> (i32, i32) {
    %c0_i32 = arith.constant 0 : i32
    %c0_i32_0 = arith.constant 0 : i32
    %c0_i32_1 = arith.constant 0 : i32
    return %c0_i32, %c0_i32_0 : i32, i32
  }
  func.func @transform_8(%arg0: i32) -> (i32, i32) {
    %c0_i32 = arith.constant 0 : i32
    %c0_i32_0 = arith.constant 0 : i32
    %c0_i32_1 = arith.constant 0 : i32
    return %c0_i32, %c0_i32_0 : i32, i32
  }
  func.func @transform_9(%arg0: i32) -> (i32, i32, i32) {
    %c0_i32 = arith.constant 0 : i32
    %c0_i32_0 = arith.constant 0 : i32
    %c0_i32_1 = arith.constant 0 : i32
    return %arg0, %c0_i32, %c0_i32_0 : i32, i32, i32
  }
}

</mosaic_0001>

<llo_original>
// kernel: tpu_custom_call.1
$region0: #{tpu_custom_call.1}
  #allocation0 [shape = 'u32[]', space=smem, size = 0x4, offset = 0x4, fixed_abs, tag = 'smem constant byte address 0x4 - core index']
  #allocation1 [shape = 'u32[144,128]{1,0:T(1,128)}', space=vmem, size = 0x12000, scoped, tag = 'internal scratch']
  %s0 = inlined_call_operand.vmem [shape: f32[4,8,32], index: 0, kind: input, shape index: {}]
  %s1 = inlined_call_operand.vmem [shape: f32[4,8,32], index: 1, kind: input, shape index: {}]
  %s2 = inlined_call_operand.vmem [shape: f32[4,8,32], index: 2, kind: input, shape index: {}]
  %s3 = inlined_call_operand.vmem [shape: f32[32,16], index: 3, kind: input, shape index: {}]
  %s4 = inlined_call_operand.vmem [shape: f32[1,16], index: 4, kind: input, shape index: {}]
  %s5 = inlined_call_operand.vmem [shape: f32[32,16], index: 5, kind: input, shape index: {}]
  %s6 = inlined_call_operand.vmem [shape: f32[1,16], index: 6, kind: input, shape index: {}]
  %s7 = inlined_call_operand.vmem [shape: f32[32,16], index: 7, kind: input, shape index: {}]
  %s8 = inlined_call_operand.vmem [shape: f32[1,16], index: 8, kind: input, shape index: {}]
  %s9 = inlined_call_operand.hbm [shape: f32[4,8,16], index: 9, kind: output, shape index: {}]
  %s10 = sld [smem:[#allocation0]]
  $region69: #{tpu_custom_call.1} parent=0
    _
  %s12 = ssub.s32 1, %s10
  %s13 = scalar_select 0, %s12, %s10
  $region1: #{tpu_custom_call.1} parent=0
    #allocation2 [shape = 'u8[16384]{0}', space=vmem, size = 0x4000, scoped, tag = 'output window, operand 0']
    #allocation3 [shape = 's32[2]{0}', space=sflag, size = 0x8, scoped, tag = 'scoped memory for tpu_custom_call.1']
    %14 = vsyncpa [#allocation3], 0
    %s15 = scalar_lea.sflag [#allocation3], 1
    %16 = vsyncpa %s15, 0
    loop: start=0, step=1, limit=4
    $region2: #{tpu_custom_call.1} parent=1 // loop_pre_header
      _
    $region3: #{tpu_custom_call.1} parent=1 // loop_header
      %s18 = sphi 0, %s22
      %p19 = scmp.ge.s32.totalorder %s18, 4
      %s28 = sphi 0, %s30
      %s31 = sphi 0, %s28
      %s32 = sphi 0, %s31
      %s48 = sphi 0, %s32
      %s54 = sphi 0, %s56
      %s57 = sphi 0, %s54
      %s58 = sphi 0, %s57
      %s74 = sphi 0, %s58
      %s80 = sphi 0, %s82
      %s83 = sphi 0, %s80
      %s84 = sphi 0, %s83
      %s100 = sphi 0, %s84
      %s104 = sphi 0, %s104
      %s106 = sphi 0, %s104
      %s107 = sphi 0, %s106
      %s121 = sphi 0, %s107
      %s125 = sphi 0, %s125
      %s127 = sphi 0, %s125
      %s128 = sphi 0, %s127
      %s142 = sphi 0, %s128
      %s146 = sphi 0, %s146
      %s148 = sphi 0, %s146
      %s149 = sphi 0, %s148
      %s163 = sphi 0, %s149
      %s167 = sphi 0, %s167
      %s169 = sphi 0, %s167
      %s170 = sphi 0, %s169
      %s184 = sphi 0, %s170
      %s188 = sphi 0, %s188
      %s190 = sphi 0, %s188
      %s191 = sphi 0, %s190
      %s205 = sphi 0, %s191
      %s209 = sphi 0, %s209
      %s211 = sphi 0, %s209
      %s212 = sphi 0, %s211
      %s226 = sphi 0, %s212
      %s232 = sphi 0, %s234
      %s235 = sphi 0, %s232
      %s236 = sphi 0, %s235
      %s252 = sphi 0, %s236
    $region4: #{tpu_custom_call.1} parent=1 // loop_header_branch
      %21 = sbr.rel (%p19) target = $region8
    $region5: #{tpu_custom_call.1} parent=1 // loop_body
      %s23 = ssub.s32 %s18, 1
      %s24 = ssub.s32 %s18, 2
      %s25 = sadd.s32 %s18, 1
      %s26 = ssub.s32 %s18, %s25
      %p27 = scmp.eq.s32.totalorder %s26, 0
      %s29 = sadd.s32 %s28, 1
      %s30 = scalar_select %p27, %s28, %s29
      %p33 = pneg %p27
      %p34 = scmp.eq.s32.totalorder %s18, 1
      %p35 = por %p33, %p34
      %p36 = scmp.ne.s32.totalorder %s28, %s31
      %p37 = scmp.eq.s32.totalorder %s18, 0
      %p38 = por %p36, %p37
      %p39 = scmp.ne.s32.totalorder %s28, %s31
      %p40 = scmp.eq.s32.totalorder %s23, 1
      %p41 = por %p39, %p40
      %p42 = scmp.ne.s32.totalorder %s31, %s32
      %p43 = scmp.eq.s32.totalorder %s23, 0
      %p44 = por %p42, %p43
      %p45 = scmp.ne.s32.totalorder %s31, %s32
      %p46 = scmp.eq.s32.totalorder %s24, 1
      %p47 = por %p45, %p46
      %p49 = scmp.ne.s32.totalorder %s32, %s48
      %p50 = scmp.eq.s32.totalorder %s24, 0
      %p51 = por %p49, %p50
      %s52 = ssub.s32 %s18, %s25
      %p53 = scmp.eq.s32.totalorder %s52, 0
      %s55 = sadd.s32 %s54, 1
      %s56 = scalar_select %p53, %s54, %s55
      %p59 = pneg %p53
      %p60 = scmp.eq.s32.totalorder %s18, 1
      %p61 = por %p59, %p60
      %p62 = scmp.ne.s32.totalorder %s54, %s57
      %p63 = scmp.eq.s32.totalorder %s18, 0
      %p64 = por %p62, %p63
      %p65 = scmp.ne.s32.totalorder %s54, %s57
      %p66 = scmp.eq.s32.totalorder %s23, 1
      %p67 = por %p65, %p66
      %p68 = scmp.ne.s32.totalorder %s57, %s58
      %p69 = scmp.eq.s32.totalorder %s23, 0
      %p70 = por %p68, %p69
      %p71 = scmp.ne.s32.totalorder %s57, %s58
      %p72 = scmp.eq.s32.totalorder %s24, 1
      %p73 = por %p71, %p72
      %p75 = scmp.ne.s32.totalorder %s58, %s74
      %p76 = scmp.eq.s32.totalorder %s24, 0
      %p77 = por %p75, %p76
      %s78 = ssub.s32 %s18, %s25
      %p79 = scmp.eq.s32.totalorder %s78, 0
      %s81 = sadd.s32 %s80, 1
      %s82 = scalar_select %p79, %s80, %s81
      %p85 = pneg %p79
      %p86 = scmp.eq.s32.totalorder %s18, 1
      %p87 = por %p85, %p86
      %p88 = scmp.ne.s32.totalorder %s80, %s83
      %p89 = scmp.eq.s32.totalorder %s18, 0
      %p90 = por %p88, %p89
      %p91 = scmp.ne.s32.totalorder %s80, %s83
      %p92 = scmp.eq.s32.totalorder %s23, 1
      %p93 = por %p91, %p92
      %p94 = scmp.ne.s32.totalorder %s83, %s84
      %p95 = scmp.eq.s32.totalorder %s23, 0
      %p96 = por %p94, %p95
      %p97 = scmp.ne.s32.totalorder %s83, %s84
      %p98 = scmp.eq.s32.totalorder %s24, 1
      %p99 = por %p97, %p98
      %p101 = scmp.ne.s32.totalorder %s84, %s100
      %p102 = scmp.eq.s32.totalorder %s24, 0
      %p103 = por %p101, %p102
      %s105 = sadd.s32 %s104, 1
      %p108 = scmp.eq.s32.totalorder %s18, 1
      %p109 = scmp.ne.s32.totalorder %s104, %s106
      %p110 = scmp.eq.s32.totalorder %s18, 0
      %p111 = por %p109, %p110
      %p112 = scmp.ne.s32.totalorder %s104, %s106
      %p113 = scmp.eq.s32.totalorder %s23, 1
      %p114 = por %p112, %p113
      %p115 = scmp.ne.s32.totalorder %s106, %s107
      %p116 = scmp.eq.s32.totalorder %s23, 0
      %p117 = por %p115, %p116
      %p118 = scmp.ne.s32.totalorder %s106, %s107
      %p119 = scmp.eq.s32.totalorder %s24, 1
      %p120 = por %p118, %p119
      %p122 = scmp.ne.s32.totalorder %s107, %s121
      %p123 = scmp.eq.s32.totalorder %s24, 0
      %p124 = por %p122, %p123
      %s126 = sadd.s32 %s125, 1
      %p129 = scmp.eq.s32.totalorder %s18, 1
      %p130 = scmp.ne.s32.totalorder %s125, %s127
      %p131 = scmp.eq.s32.totalorder %s18, 0
      %p132 = por %p130, %p131
      %p133 = scmp.ne.s32.totalorder %s125, %s127
      %p134 = scmp.eq.s32.totalorder %s23, 1
      %p135 = por %p133, %p134
      %p136 = scmp.ne.s32.totalorder %s127, %s128
      %p137 = scmp.eq.s32.totalorder %s23, 0
      %p138 = por %p136, %p137
      %p139 = scmp.ne.s32.totalorder %s127, %s128
      %p140 = scmp.eq.s32.totalorder %s24, 1
      %p141 = por %p139, %p140
      %p143 = scmp.ne.s32.totalorder %s128, %s142
      %p144 = scmp.eq.s32.totalorder %s24, 0
      %p145 = por %p143, %p144
      %s147 = sadd.s32 %s146, 1
      %p150 = scmp.eq.s32.totalorder %s18, 1
      %p151 = scmp.ne.s32.totalorder %s146, %s148
      %p152 = scmp.eq.s32.totalorder %s18, 0
      %p153 = por %p151, %p152
      %p154 = scmp.ne.s32.totalorder %s146, %s148
      %p155 = scmp.eq.s32.totalorder %s23, 1
      %p156 = por %p154, %p155
      %p157 = scmp.ne.s32.totalorder %s148, %s149
      %p158 = scmp.eq.s32.totalorder %s23, 0
      %p159 = por %p157, %p158
      %p160 = scmp.ne.s32.totalorder %s148, %s149
      %p161 = scmp.eq.s32.totalorder %s24, 1
      %p162 = por %p160, %p161
      %p164 = scmp.ne.s32.totalorder %s149, %s163
      %p165 = scmp.eq.s32.totalorder %s24, 0
      %p166 = por %p164, %p165
      %s168 = sadd.s32 %s167, 1
      %p171 = scmp.eq.s32.totalorder %s18, 1
      %p172 = scmp.ne.s32.totalorder %s167, %s169
      %p173 = scmp.eq.s32.totalorder %s18, 0
      %p174 = por %p172, %p173
      %p175 = scmp.ne.s32.totalorder %s167, %s169
      %p176 = scmp.eq.s32.totalorder %s23, 1
      %p177 = por %p175, %p176
      %p178 = scmp.ne.s32.totalorder %s169, %s170
      %p179 = scmp.eq.s32.totalorder %s23, 0
      %p180 = por %p178, %p179
      %p181 = scmp.ne.s32.totalorder %s169, %s170
      %p182 = scmp.eq.s32.totalorder %s24, 1
      %p183 = por %p181, %p182
      %p185 = scmp.ne.s32.totalorder %s170, %s184
      %p186 = scmp.eq.s32.totalorder %s24, 0
      %p187 = por %p185, %p186
      %s189 = sadd.s32 %s188, 1
      %p192 = scmp.eq.s32.totalorder %s18, 1
      %p193 = scmp.ne.s32.totalorder %s188, %s190
      %p194 = scmp.eq.s32.totalorder %s18, 0
      %p195 = por %p193, %p194
      %p196 = scmp.ne.s32.totalorder %s188, %s190
      %p197 = scmp.eq.s32.totalorder %s23, 1
      %p198 = por %p196, %p197
      %p199 = scmp.ne.s32.totalorder %s190, %s191
      %p200 = scmp.eq.s32.totalorder %s23, 0
      %p201 = por %p199, %p200
      %p202 = scmp.ne.s32.totalorder %s190, %s191
      %p203 = scmp.eq.s32.totalorder %s24, 1
      %p204 = por %p202, %p203
      %p206 = scmp.ne.s32.totalorder %s191, %s205
      %p207 = scmp.eq.s32.totalorder %s24, 0
      %p208 = por %p206, %p207
      %s210 = sadd.s32 %s209, 1
      %p213 = scmp.eq.s32.totalorder %s18, 1
      %p214 = scmp.ne.s32.totalorder %s209, %s211
      %p215 = scmp.eq.s32.totalorder %s18, 0
      %p216 = por %p214, %p215
      %p217 = scmp.ne.s32.totalorder %s209, %s211
      %p218 = scmp.eq.s32.totalorder %s23, 1
      %p219 = por %p217, %p218
      %p220 = scmp.ne.s32.totalorder %s211, %s212
      %p221 = scmp.eq.s32.totalorder %s23, 0
      %p222 = por %p220, %p221
      %p223 = scmp.ne.s32.totalorder %s211, %s212
      %p224 = scmp.eq.s32.totalorder %s24, 1
      %p225 = por %p223, %p224
      %p227 = scmp.ne.s32.totalorder %s212, %s226
      %p228 = scmp.eq.s32.totalorder %s24, 0
      %p229 = por %p227, %p228
      %s230 = ssub.s32 %s18, %s25
      %p231 = scmp.eq.s32.totalorder %s230, 0
      %s233 = sadd.s32 %s232, 1
      %s234 = scalar_select %p231, %s232, %s233
      %p237 = pneg %p231
      %p238 = scmp.eq.s32.totalorder %s18, 1
      %p239 = por %p237, %p238
      %p240 = scmp.ne.s32.totalorder %s232, %s235
      %p241 = scmp.eq.s32.totalorder %s18, 0
      %p242 = por %p240, %p241
      %p243 = scmp.ne.s32.totalorder %s232, %s235
      %p244 = scmp.eq.s32.totalorder %s23, 1
      %p245 = por %p243, %p244
      %p246 = scmp.ne.s32.totalorder %s235, %s236
      %p247 = scmp.eq.s32.totalorder %s23, 0
      %p248 = por %p246, %p247
      %p249 = scmp.ne.s32.totalorder %s235, %s236
      %p250 = scmp.eq.s32.totalorder %s24, 1
      %p251 = por %p249, %p250
      %p253 = scmp.ne.s32.totalorder %s236, %s252
      %p254 = scmp.eq.s32.totalorder %s24, 0
      %p255 = por %p253, %p254
      %p256 = scmp.le.s32.totalorder 1, %s18
      %p257 = scmp.lt.s32.totalorder %s18, 3
      %p258 = pnand %p256, %p257
      %p259 = pneg %p258
      // Predicated region
      $region9: #{tpu_custom_call.1} parent=5 // pred_check
        _
      $region10: #{tpu_custom_call.1} parent=5 // pred_check_branch
        %261 = sbr.rel (%p258) target = $region12
      $region11: #{tpu_custom_call.1} parent=5 // pred_region
        %s262 = ssub.s32 %s18, 1
        // Predicated region
        $region13: #{tpu_custom_call.1} parent=11 // pred_check
          %p263 = pneg %p117
        $region14: #{tpu_custom_call.1} parent=11 // pred_check_branch
          %265 = sbr.rel (%p263) target = $region16
        $region15: #{tpu_custom_call.1} parent=11 // pred_region
          _
        $region16: #{tpu_custom_call.1} parent=11 // pred_fallthru
          _
        // Predicated region
        $region17: #{tpu_custom_call.1} parent=11 // pred_check
          %p266 = pneg %p138
        $region18: #{tpu_custom_call.1} parent=11 // pred_check_branch
          %268 = sbr.rel (%p266) target = $region20
        $region19: #{tpu_custom_call.1} parent=11 // pred_region
          _
        $region20: #{tpu_custom_call.1} parent=11 // pred_fallthru
          _
        // Predicated region
        $region21: #{tpu_custom_call.1} parent=11 // pred_check
          %p269 = pneg %p159
        $region22: #{tpu_custom_call.1} parent=11 // pred_check_branch
          %271 = sbr.rel (%p269) target = $region24
        $region23: #{tpu_custom_call.1} parent=11 // pred_region
          _
        $region24: #{tpu_custom_call.1} parent=11 // pred_fallthru
          _
        // Predicated region
        $region25: #{tpu_custom_call.1} parent=11 // pred_check
          %p272 = pneg %p180
        $region26: #{tpu_custom_call.1} parent=11 // pred_check_branch
          %274 = sbr.rel (%p272) target = $region28
        $region27: #{tpu_custom_call.1} parent=11 // pred_region
          _
        $region28: #{tpu_custom_call.1} parent=11 // pred_fallthru
          _
        // Predicated region
        $region29: #{tpu_custom_call.1} parent=11 // pred_check
          %p275 = pneg %p201
        $region30: #{tpu_custom_call.1} parent=11 // pred_check_branch
          %277 = sbr.rel (%p275) target = $region32
        $region31: #{tpu_custom_call.1} parent=11 // pred_region
          _
        $region32: #{tpu_custom_call.1} parent=11 // pred_fallthru
          _
        // Predicated region
        $region33: #{tpu_custom_call.1} parent=11 // pred_check
          %p278 = pneg %p222
        $region34: #{tpu_custom_call.1} parent=11 // pred_check_branch
          %280 = sbr.rel (%p278) target = $region36
        $region35: #{tpu_custom_call.1} parent=11 // pred_region
          _
        $region36: #{tpu_custom_call.1} parent=11 // pred_fallthru
          _
      $region12: #{tpu_custom_call.1} parent=5 // pred_fallthru
        _
      %p281 = scmp.lt.s32.totalorder %s18, 2
      // Predicated region
      $region37: #{tpu_custom_call.1} parent=5 // pred_check
        %p282 = pneg %p281
      $region38: #{tpu_custom_call.1} parent=5 // pred_check_branch
        %284 = sbr.rel (%p282) target = $region40
      $region39: #{tpu_custom_call.1} parent=5 // pred_region
        // Predicated region
        $region41: #{tpu_custom_call.1} parent=39 // pred_check
          %p285 = pneg %p38
        $region42: #{tpu_custom_call.1} parent=39 // pred_check_branch
          %287 = sbr.rel (%p285) target = $region44
        $region43: #{tpu_custom_call.1} parent=39 // pred_region
          %s288 = smul.u32 2, %s18
          %p289 = scmp.lt.s32.totalorder %s288, 3
          %s290 = scalar_select %p289, %s288, 3
          %s291 = smul.addr %s290, 8
          %s292 = scalar_lea.vmem %s0, %s291
          %s293 = smul.u32 2, %s18
        $region44: #{tpu_custom_call.1} parent=39 // pred_fallthru
          _
        // Predicated region
        $region45: #{tpu_custom_call.1} parent=39 // pred_check
          %p294 = pneg %p64
        $region46: #{tpu_custom_call.1} parent=39 // pred_check_branch
          %296 = sbr.rel (%p294) target = $region48
        $region47: #{tpu_custom_call.1} parent=39 // pred_region
          %s297 = smul.u32 2, %s18
          %p298 = scmp.lt.s32.totalorder %s297, 3
          %s299 = scalar_select %p298, %s297, 3
          %s300 = smul.addr %s299, 8
          %s301 = scalar_lea.vmem %s1, %s300
          %s302 = smul.u32 2, %s18
        $region48: #{tpu_custom_call.1} parent=39 // pred_fallthru
          _
        // Predicated region
        $region49: #{tpu_custom_call.1} parent=39 // pred_check
          %p303 = pneg %p90
        $region50: #{tpu_custom_call.1} parent=39 // pred_check_branch
          %305 = sbr.rel (%p303) target = $region52
        $region51: #{tpu_custom_call.1} parent=39 // pred_region
          %s306 = smul.u32 2, %s18
          %p307 = scmp.lt.s32.totalorder %s306, 3
          %s308 = scalar_select %p307, %s306, 3
          %s309 = smul.addr %s308, 8
          %s310 = scalar_lea.vmem %s2, %s309
          %s311 = smul.u32 2, %s18
        $region52: #{tpu_custom_call.1} parent=39 // pred_fallthru
          _
      $region40: #{tpu_custom_call.1} parent=5 // pred_fallthru
        _
      %p312 = scmp.le.s32.totalorder 1, %s18
      %p313 = scmp.lt.s32.totalorder %s18, 3
      %p314 = pnand %p312, %p313
      %p315 = pneg %p314
      // Predicated region
      $region53: #{tpu_custom_call.1} parent=5 // pred_check
        _
      $region54: #{tpu_custom_call.1} parent=5 // pred_check_branch
        %317 = sbr.rel (%p314) target = $region56
      $region55: #{tpu_custom_call.1} parent=5 // pred_region
        %s318 = ssub.s32 %s18, 1
        %s319 = smul.u32 2, %s23
        %p320 = scmp.lt.s32.totalorder %s319, 3
        %s321 = scalar_select %p320, %s319, 3
        %s322 = smul.addr %s321, 8
        %s323 = scalar_lea.vmem %s0, %s322
        %p324 = pneg %p44
        %p325 = pneg %p41
        %s326 = smul.u32 2, %s23
        %p327 = scmp.lt.s32.totalorder %s326, 3
        %s328 = scalar_select %p327, %s326, 3
        %s329 = smul.addr %s328, 8
        %s330 = scalar_lea.vmem %s1, %s329
        %p331 = pneg %p70
        %p332 = pneg %p67
        %s333 = smul.u32 2, %s23
        %p334 = scmp.lt.s32.totalorder %s333, 3
        %s335 = scalar_select %p334, %s333, 3
        %s336 = smul.addr %s335, 8
        %s337 = scalar_lea.vmem %s2, %s336
        %p338 = pneg %p96
        %p339 = pneg %p93
        %p340 = pneg %p117
        %p341 = pneg %p114
        %p342 = pneg %p138
        %p343 = pneg %p135
        %p344 = pneg %p159
        %p345 = pneg %p156
        %p346 = pneg %p180
        %p347 = pneg %p177
        %p348 = pneg %p201
        %p349 = pneg %p198
        %p350 = pneg %p222
        %p351 = pneg %p219
        %p352 = pneg %p248
        %p353 = pneg %p245
        %s354 = sand.u32 %s235, 1
        %s355 = scalar_lea.sflag [#allocation3], %s354
        %s356 = sand.u32 %s235, 1
        %s357 = smul.addr %s356, 16
        %s358 = scalar_lea.vmem [#allocation2], %s357
        %s359 = smul.u32 2, %s23
        %p360 = scmp.lt.s32.totalorder %s359, 3
        %s361 = scalar_select %p360, %s359, 3
        %s362 = smul.addr %s361, 8
        %s363 = scalar_lea.vmem %s0, %s362
        %s364 = smul.u32 2, %s23
        %s365 = smul.u32 2, %s23
        %p366 = scmp.lt.s32.totalorder %s365, 3
        %s367 = scalar_select %p366, %s365, 3
        %s368 = smul.addr %s367, 8
        %s369 = scalar_lea.vmem %s1, %s368
        %s370 = smul.u32 2, %s23
        %s371 = smul.u32 2, %s23
        %p372 = scmp.lt.s32.totalorder %s371, 3
        %s373 = scalar_select %p372, %s371, 3
        %s374 = smul.addr %s373, 8
        %s375 = scalar_lea.vmem %s2, %s374
        %s376 = smul.u32 2, %s23
        %s377 = smul.u32 2, %s23
        %v378 = vld [vmem:[%s363] sm:$0xff]
        %v379 = vld [vmem:[%s363 + $0x8] sm:$0xff]
        %v380 = vld [vmem:[%s369] sm:$0xff]
        %v381 = vld [vmem:[%s369 + $0x8] sm:$0xff]
        %v382 = vld [vmem:[%s375] sm:$0xff]
        %v383 = vld [vmem:[%s375 + $0x8] sm:$0xff]
        %v384 = vld [vmem:[%s3] sm:$0xff]
        %v385 = vld [vmem:[%s3 + $0x8] sm:$0xff]
        %v386 = vld [vmem:[%s3 + $0x10] sm:$0xff]
        %v387 = vld [vmem:[%s3 + $0x18] sm:$0xff]
        %v388 = vld [vmem:[%s4] sm:$0x1]
        %v390 = vlaneseq
        %v391 = vshrl.u32 %v390, 7
        %v392 = vsub.s32 0, %v391
        %v393 = vrot.slane %v388, %v392
        %vm395 = vcmask 261120
        %v397 = vsel %vm395, %v378, 0
        %v400 = vsel %vm395, %v379, 0
        %402 = vmatprep.subr.mxu0 0.0
        %403 = vmatpush1.msra.mxu0 0.0
        %404 = vmatprep.subr.mxu0 0.0
        %405 = vmatpush1.msra.mxu0 0.0
        %406 = vmatprep.subr.mxu0 0.0
        %407 = vmatpush1.msra.mxu0 0.0
        %408 = vmatprep.subr.mxu0 0.0
        %409 = vmatpush1.msra.mxu0 0.0
        %410 = vmatprep.subr.mxu0 0.0
        %411 = vmatpush1.msra.mxu0 0.0
        %412 = vmatprep.subr.mxu0 0.0
        %413 = vmatpush1.msra.mxu0 0.0
        %414 = vmatprep.subr.mxu0 0.0
        %415 = vmatpush1.msra.mxu0 0.0
        %416 = vmatprep.subr.mxu0 0.0
        %417 = vmatpush1.msra.mxu0 0.0
        %418 = vmatprep.subr.mxu0 0.0
        %419 = vmatpush1.msra.mxu0 0.0
        %420 = vmatprep.subr.mxu0 0.0
        %421 = vmatpush1.msra.mxu0 0.0
        %422 = vmatprep.subr.mxu0 0.0
        %423 = vmatpush1.msra.mxu0 0.0
        %424 = vmatprep.subr.mxu0 0.0
        %425 = vmatpush1.msra.mxu0 0.0
        %426 = vmatprep.subr.mxu0 0.0
        %427 = vmatpush1.msra.mxu0 %v387
        %428 = vmatprep.subr.mxu0 0.0
        %429 = vmatpush1.msra.mxu0 %v386
        %430 = vmatprep.subr.mxu0 0.0
        %431 = vmatpush1.msra.mxu0 %v385
        %432 = vmatprep.subr.mxu0 0.0
        %433 = vmatpush1.msra.mxu0 %v384
        %434 = vmatprep.subr.mxu0 0.0
        %435 = vmatpush2.msra.mxu0 0.0
        %436 = vmatprep.subr.mxu0 0.0
        %437 = vmatpush2.msra.mxu0 0.0
        %438 = vmatprep.subr.mxu0 0.0
        %439 = vmatpush2.msra.mxu0 0.0
        %440 = vmatprep.subr.mxu0 0.0
        %441 = vmatpush2.msra.mxu0 0.0
        %442 = vmatprep.subr.mxu0 0.0
        %443 = vmatpush2.msra.mxu0 0.0
        %444 = vmatprep.subr.mxu0 0.0
        %445 = vmatpush2.msra.mxu0 0.0
        %446 = vmatprep.subr.mxu0 0.0
        %447 = vmatpush2.msra.mxu0 0.0
        %448 = vmatprep.subr.mxu0 0.0
        %449 = vmatpush2.msra.mxu0 0.0
        %450 = vmatprep.subr.mxu0 0.0
        %451 = vmatpush2.msra.mxu0 0.0
        %452 = vmatprep.subr.mxu0 0.0
        %453 = vmatpush2.msra.mxu0 0.0
        %454 = vmatprep.subr.mxu0 0.0
        %455 = vmatpush2.msra.mxu0 0.0
        %456 = vmatprep.subr.mxu0 0.0
        %457 = vmatpush2.msra.mxu0 0.0
        %458 = vmatprep.subr.mxu0 0.0
        %459 = vmatpush2.msra.mxu0 0.0
        %460 = vmatprep.subr.mxu0 0.0
        %461 = vmatpush2.msra.mxu0 0.0
        %462 = vmatprep.subr.mxu0 0.0
        %463 = vmatpush2.msra.mxu0 0.0
        %464 = vmatprep.subr.mxu0 0.0
        %465 = vmatpush2.msra.mxu0 0.0
        %466 = vmatprep.mubr.f32.mxu0 0.0
        %467 = vmatmul.mubr.f32.gmra.mxu0 %v397
        %v468 = vpop.f32.mrf.mxu0
        %v469 = vadd.f32 %v393, %v468
        %v470 = vpop.f32.mrf.mxu0
        %471 = vmatprep.mubr.f32.mxu0 0.0
        %472 = vmatmul.mubr.f32.gmra.mxu0 %v400
        %v473 = vpop.f32.mrf.mxu0
        %v474 = vadd.f32 %v393, %v473
        %v475 = vpop.f32.mrf.mxu0
        %476 = vdwg.mxu0
        %v477 = vld [vmem:[%s5] sm:$0xff]
        %v478 = vld [vmem:[%s5 + $0x8] sm:$0xff]
        %v479 = vld [vmem:[%s5 + $0x10] sm:$0xff]
        %v480 = vld [vmem:[%s5 + $0x18] sm:$0xff]
        %v481 = vld [vmem:[%s6] sm:$0x1]
        %v483 = vlaneseq
        %v484 = vshrl.u32 %v483, 7
        %v485 = vsub.s32 0, %v484
        %v486 = vrot.slane %v481, %v485
        %v489 = vsel %vm395, %v380, 0
        %v492 = vsel %vm395, %v381, 0
        %494 = vmatprep.subr.mxu0 0.0
        %495 = vmatpush1.msra.mxu0 0.0
        %496 = vmatprep.subr.mxu0 0.0
        %497 = vmatpush1.msra.mxu0 0.0
        %498 = vmatprep.subr.mxu0 0.0
        %499 = vmatpush1.msra.mxu0 0.0
        %500 = vmatprep.subr.mxu0 0.0
        %501 = vmatpush1.msra.mxu0 0.0
        %502 = vmatprep.subr.mxu0 0.0
        %503 = vmatpush1.msra.mxu0 0.0
        %504 = vmatprep.subr.mxu0 0.0
        %505 = vmatpush1.msra.mxu0 0.0
        %506 = vmatprep.subr.mxu0 0.0
        %507 = vmatpush1.msra.mxu0 0.0
        %508 = vmatprep.subr.mxu0 0.0
        %509 = vmatpush1.msra.mxu0 0.0
        %510 = vmatprep.subr.mxu0 0.0
        %511 = vmatpush1.msra.mxu0 0.0
        %512 = vmatprep.subr.mxu0 0.0
        %513 = vmatpush1.msra.mxu0 0.0
        %514 = vmatprep.subr.mxu0 0.0
        %515 = vmatpush1.msra.mxu0 0.0
        %516 = vmatprep.subr.mxu0 0.0
        %517 = vmatpush1.msra.mxu0 0.0
        %518 = vmatprep.subr.mxu0 0.0
        %519 = vmatpush1.msra.mxu0 %v480
        %520 = vmatprep.subr.mxu0 0.0
        %521 = vmatpush1.msra.mxu0 %v479
        %522 = vmatprep.subr.mxu0 0.0
        %523 = vmatpush1.msra.mxu0 %v478
        %524 = vmatprep.subr.mxu0 0.0
        %525 = vmatpush1.msra.mxu0 %v477
        %526 = vmatprep.subr.mxu0 0.0
        %527 = vmatpush2.msra.mxu0 0.0
        %528 = vmatprep.subr.mxu0 0.0
        %529 = vmatpush2.msra.mxu0 0.0
        %530 = vmatprep.subr.mxu0 0.0
        %531 = vmatpush2.msra.mxu0 0.0
        %532 = vmatprep.subr.mxu0 0.0
        %533 = vmatpush2.msra.mxu0 0.0
        %534 = vmatprep.subr.mxu0 0.0
        %535 = vmatpush2.msra.mxu0 0.0
        %536 = vmatprep.subr.mxu0 0.0
        %537 = vmatpush2.msra.mxu0 0.0
        %538 = vmatprep.subr.mxu0 0.0
        %539 = vmatpush2.msra.mxu0 0.0
        %540 = vmatprep.subr.mxu0 0.0
        %541 = vmatpush2.msra.mxu0 0.0
        %542 = vmatprep.subr.mxu0 0.0
        %543 = vmatpush2.msra.mxu0 0.0
        %544 = vmatprep.subr.mxu0 0.0
        %545 = vmatpush2.msra.mxu0 0.0
        %546 = vmatprep.subr.mxu0 0.0
        %547 = vmatpush2.msra.mxu0 0.0
        %548 = vmatprep.subr.mxu0 0.0
        %549 = vmatpush2.msra.mxu0 0.0
        %550 = vmatprep.subr.mxu0 0.0
        %551 = vmatpush2.msra.mxu0 0.0
        %552 = vmatprep.subr.mxu0 0.0
        %553 = vmatpush2.msra.mxu0 0.0
        %554 = vmatprep.subr.mxu0 0.0
        %555 = vmatpush2.msra.mxu0 0.0
        %556 = vmatprep.subr.mxu0 0.0
        %557 = vmatpush2.msra.mxu0 0.0
        %558 = vmatprep.mubr.f32.mxu0 0.0
        %559 = vmatmul.mubr.f32.gmra.mxu0 %v489
        %v560 = vpop.f32.mrf.mxu0
        %v561 = vadd.f32 %v486, %v560
        %v562 = vpop.f32.mrf.mxu0
        %563 = vmatprep.mubr.f32.mxu0 0.0
        %564 = vmatmul.mubr.f32.gmra.mxu0 %v492
        %v565 = vpop.f32.mrf.mxu0
        %v566 = vadd.f32 %v486, %v565
        %v567 = vpop.f32.mrf.mxu0
        %568 = vdwg.mxu0
        %v569 = vld [vmem:[%s7] sm:$0xff]
        %v570 = vld [vmem:[%s7 + $0x8] sm:$0xff]
        %v571 = vld [vmem:[%s7 + $0x10] sm:$0xff]
        %v572 = vld [vmem:[%s7 + $0x18] sm:$0xff]
        %v573 = vld [vmem:[%s8] sm:$0x1]
        %v575 = vlaneseq
        %v576 = vshrl.u32 %v575, 7
        %v577 = vsub.s32 0, %v576
        %v578 = vrot.slane %v573, %v577
        %v581 = vsel %vm395, %v382, 0
        %v584 = vsel %vm395, %v383, 0
        %586 = vmatprep.subr.mxu0 0.0
        %587 = vmatpush1.msra.mxu0 0.0
        %588 = vmatprep.subr.mxu0 0.0
        %589 = vmatpush1.msra.mxu0 0.0
        %590 = vmatprep.subr.mxu0 0.0
        %591 = vmatpush1.msra.mxu0 0.0
        %592 = vmatprep.subr.mxu0 0.0
        %593 = vmatpush1.msra.mxu0 0.0
        %594 = vmatprep.subr.mxu0 0.0
        %595 = vmatpush1.msra.mxu0 0.0
        %596 = vmatprep.subr.mxu0 0.0
        %597 = vmatpush1.msra.mxu0 0.0
        %598 = vmatprep.subr.mxu0 0.0
        %599 = vmatpush1.msra.mxu0 0.0
        %600 = vmatprep.subr.mxu0 0.0
        %601 = vmatpush1.msra.mxu0 0.0
        %602 = vmatprep.subr.mxu0 0.0
        %603 = vmatpush1.msra.mxu0 0.0
        %604 = vmatprep.subr.mxu0 0.0
        %605 = vmatpush1.msra.mxu0 0.0
        %606 = vmatprep.subr.mxu0 0.0
        %607 = vmatpush1.msra.mxu0 0.0
        %608 = vmatprep.subr.mxu0 0.0
        %609 = vmatpush1.msra.mxu0 0.0
        %610 = vmatprep.subr.mxu0 0.0
        %611 = vmatpush1.msra.mxu0 %v572
        %612 = vmatprep.subr.mxu0 0.0
        %613 = vmatpush1.msra.mxu0 %v571
        %614 = vmatprep.subr.mxu0 0.0
        %615 = vmatpush1.msra.mxu0 %v570
        %616 = vmatprep.subr.mxu0 0.0
        %617 = vmatpush1.msra.mxu0 %v569
        %618 = vmatprep.subr.mxu0 0.0
        %619 = vmatpush2.msra.mxu0 0.0
        %620 = vmatprep.subr.mxu0 0.0
        %621 = vmatpush2.msra.mxu0 0.0
        %622 = vmatprep.subr.mxu0 0.0
        %623 = vmatpush2.msra.mxu0 0.0
        %624 = vmatprep.subr.mxu0 0.0
        %625 = vmatpush2.msra.mxu0 0.0
        %626 = vmatprep.subr.mxu0 0.0
        %627 = vmatpush2.msra.mxu0 0.0
        %628 = vmatprep.subr.mxu0 0.0
        %629 = vmatpush2.msra.mxu0 0.0
        %630 = vmatprep.subr.mxu0 0.0
        %631 = vmatpush2.msra.mxu0 0.0
        %632 = vmatprep.subr.mxu0 0.0
        %633 = vmatpush2.msra.mxu0 0.0
        %634 = vmatprep.subr.mxu0 0.0
        %635 = vmatpush2.msra.mxu0 0.0
        %636 = vmatprep.subr.mxu0 0.0
        %637 = vmatpush2.msra.mxu0 0.0
        %638 = vmatprep.subr.mxu0 0.0
        %639 = vmatpush2.msra.mxu0 0.0
        %640 = vmatprep.subr.mxu0 0.0
        %641 = vmatpush2.msra.mxu0 0.0
        %642 = vmatprep.subr.mxu0 0.0
        %643 = vmatpush2.msra.mxu0 0.0
        %644 = vmatprep.subr.mxu0 0.0
        %645 = vmatpush2.msra.mxu0 0.0
        %646 = vmatprep.subr.mxu0 0.0
        %647 = vmatpush2.msra.mxu0 0.0
        %648 = vmatprep.subr.mxu0 0.0
        %649 = vmatpush2.msra.mxu0 0.0
        %650 = vmatprep.mubr.f32.mxu0 0.0
        %651 = vmatmul.mubr.f32.gmra.mxu0 %v581
        %v652 = vpop.f32.mrf.mxu0
        %v653 = vadd.f32 %v578, %v652
        %v654 = vpop.f32.mrf.mxu0
        %655 = vmatprep.mubr.f32.mxu0 0.0
        %656 = vmatmul.mubr.f32.gmra.mxu0 %v584
        %v657 = vpop.f32.mrf.mxu0
        %v658 = vadd.f32 %v578, %v657
        %v659 = vpop.f32.mrf.mxu0
        %660 = vdwg.mxu0
        %v661 = vmul.f32 %v469, 0.25
        %v662 = vmul.f32 %v474, 0.25
        %vm663 = vcmask 130048
        %v665 = vsel %vm663, %v661, 0
        %v668 = vsel %vm663, %v561, 0
        %670 = vmatprep.subr.mxu0 0.0
        %671 = vmatpush1.xpose.msra.mxu0 0.0
        %672 = vmatprep.subr.mxu0 0.0
        %673 = vmatpush1.xpose.msra.mxu0 0.0
        %674 = vmatprep.subr.mxu0 0.0
        %675 = vmatpush1.xpose.msra.mxu0 0.0
        %676 = vmatprep.subr.mxu0 0.0
        %677 = vmatpush1.xpose.msra.mxu0 0.0
        %678 = vmatprep.subr.mxu0 0.0
        %679 = vmatpush1.xpose.msra.mxu0 0.0
        %680 = vmatprep.subr.mxu0 0.0
        %681 = vmatpush1.xpose.msra.mxu0 0.0
        %682 = vmatprep.subr.mxu0 0.0
        %683 = vmatpush1.xpose.msra.mxu0 0.0
        %684 = vmatprep.subr.mxu0 0.0
        %685 = vmatpush1.xpose.msra.mxu0 0.0
        %686 = vmatprep.subr.mxu0 0.0
        %687 = vmatpush1.xpose.msra.mxu0 0.0
        %688 = vmatprep.subr.mxu0 0.0
        %689 = vmatpush1.xpose.msra.mxu0 0.0
        %690 = vmatprep.subr.mxu0 0.0
        %691 = vmatpush1.xpose.msra.mxu0 0.0
        %692 = vmatprep.subr.mxu0 0.0
        %693 = vmatpush1.xpose.msra.mxu0 0.0
        %694 = vmatprep.subr.mxu0 0.0
        %695 = vmatpush1.xpose.msra.mxu0 0.0
        %696 = vmatprep.subr.mxu0 0.0
        %697 = vmatpush1.xpose.msra.mxu0 0.0
        %698 = vmatprep.subr.mxu0 0.0
        %699 = vmatpush1.xpose.msra.mxu0 0.0
        %700 = vmatprep.subr.mxu0 0.0
        %701 = vmatpush1.xpose.msra.mxu0 %v668
        %702 = vmatprep.subr.mxu0 0.0
        %703 = vmatpush2.xpose.msra.mxu0 0.0
        %704 = vmatprep.subr.mxu0 0.0
        %705 = vmatpush2.xpose.msra.mxu0 0.0
        %706 = vmatprep.subr.mxu0 0.0
        %707 = vmatpush2.xpose.msra.mxu0 0.0
        %708 = vmatprep.subr.mxu0 0.0
        %709 = vmatpush2.xpose.msra.mxu0 0.0
        %710 = vmatprep.subr.mxu0 0.0
        %711 = vmatpush2.xpose.msra.mxu0 0.0
        %712 = vmatprep.subr.mxu0 0.0
        %713 = vmatpush2.xpose.msra.mxu0 0.0
        %714 = vmatprep.subr.mxu0 0.0
        %715 = vmatpush2.xpose.msra.mxu0 0.0
        %716 = vmatprep.subr.mxu0 0.0
        %717 = vmatpush2.xpose.msra.mxu0 0.0
        %718 = vmatprep.subr.mxu0 0.0
        %719 = vmatpush2.xpose.msra.mxu0 0.0
        %720 = vmatprep.subr.mxu0 0.0
        %721 = vmatpush2.xpose.msra.mxu0 0.0
        %722 = vmatprep.subr.mxu0 0.0
        %723 = vmatpush2.xpose.msra.mxu0 0.0
        %724 = vmatprep.subr.mxu0 0.0
        %725 = vmatpush2.xpose.msra.mxu0 0.0
        %726 = vmatprep.subr.mxu0 0.0
        %727 = vmatpush2.xpose.msra.mxu0 0.0
        %728 = vmatprep.subr.mxu0 0.0
        %729 = vmatpush2.xpose.msra.mxu0 0.0
        %730 = vmatprep.subr.mxu0 0.0
        %731 = vmatpush2.xpose.msra.mxu0 0.0
        %732 = vmatprep.subr.mxu0 0.0
        %733 = vmatpush2.xpose.msra.mxu0 0.0
        %734 = vmatprep.mubr.f32.mxu0 0.0
        %735 = vmatmul.mubr.f32.gmra.mxu0 %v665
        %v736 = vpop.f32.mrf.mxu0
        %v737 = vadd.f32 0.0, %v736
        %v738 = vpop.f32.mrf.mxu0
        %739 = vdwg.mxu0
        %v741 = vsel %vm663, %v662, 0
        %v744 = vsel %vm663, %v566, 0
        %746 = vmatprep.subr.mxu0 0.0
        %747 = vmatpush1.xpose.msra.mxu0 0.0
        %748 = vmatprep.subr.mxu0 0.0
        %749 = vmatpush1.xpose.msra.mxu0 0.0
        %750 = vmatprep.subr.mxu0 0.0
        %751 = vmatpush1.xpose.msra.mxu0 0.0
        %752 = vmatprep.subr.mxu0 0.0
        %753 = vmatpush1.xpose.msra.mxu0 0.0
        %754 = vmatprep.subr.mxu0 0.0
        %755 = vmatpush1.xpose.msra.mxu0 0.0
        %756 = vmatprep.subr.mxu0 0.0
        %757 = vmatpush1.xpose.msra.mxu0 0.0
        %758 = vmatprep.subr.mxu0 0.0
        %759 = vmatpush1.xpose.msra.mxu0 0.0
        %760 = vmatprep.subr.mxu0 0.0
        %761 = vmatpush1.xpose.msra.mxu0 0.0
        %762 = vmatprep.subr.mxu0 0.0
        %763 = vmatpush1.xpose.msra.mxu0 0.0
        %764 = vmatprep.subr.mxu0 0.0
        %765 = vmatpush1.xpose.msra.mxu0 0.0
        %766 = vmatprep.subr.mxu0 0.0
        %767 = vmatpush1.xpose.msra.mxu0 0.0
        %768 = vmatprep.subr.mxu0 0.0
        %769 = vmatpush1.xpose.msra.mxu0 0.0
        %770 = vmatprep.subr.mxu0 0.0
        %771 = vmatpush1.xpose.msra.mxu0 0.0
        %772 = vmatprep.subr.mxu0 0.0
        %773 = vmatpush1.xpose.msra.mxu0 0.0
        %774 = vmatprep.subr.mxu0 0.0
        %775 = vmatpush1.xpose.msra.mxu0 0.0
        %776 = vmatprep.subr.mxu0 0.0
        %777 = vmatpush1.xpose.msra.mxu0 %v744
        %778 = vmatprep.subr.mxu0 0.0
        %779 = vmatpush2.xpose.msra.mxu0 0.0
        %780 = vmatprep.subr.mxu0 0.0
        %781 = vmatpush2.xpose.msra.mxu0 0.0
        %782 = vmatprep.subr.mxu0 0.0
        %783 = vmatpush2.xpose.msra.mxu0 0.0
        %784 = vmatprep.subr.mxu0 0.0
        %785 = vmatpush2.xpose.msra.mxu0 0.0
        %786 = vmatprep.subr.mxu0 0.0
        %787 = vmatpush2.xpose.msra.mxu0 0.0
        %788 = vmatprep.subr.mxu0 0.0
        %789 = vmatpush2.xpose.msra.mxu0 0.0
        %790 = vmatprep.subr.mxu0 0.0
        %791 = vmatpush2.xpose.msra.mxu0 0.0
        %792 = vmatprep.subr.mxu0 0.0
        %793 = vmatpush2.xpose.msra.mxu0 0.0
        %794 = vmatprep.subr.mxu0 0.0
        %795 = vmatpush2.xpose.msra.mxu0 0.0
        %796 = vmatprep.subr.mxu0 0.0
        %797 = vmatpush2.xpose.msra.mxu0 0.0
        %798 = vmatprep.subr.mxu0 0.0
        %799 = vmatpush2.xpose.msra.mxu0 0.0
        %800 = vmatprep.subr.mxu0 0.0
        %801 = vmatpush2.xpose.msra.mxu0 0.0
        %802 = vmatprep.subr.mxu0 0.0
        %803 = vmatpush2.xpose.msra.mxu0 0.0
        %804 = vmatprep.subr.mxu0 0.0
        %805 = vmatpush2.xpose.msra.mxu0 0.0
        %806 = vmatprep.subr.mxu0 0.0
        %807 = vmatpush2.xpose.msra.mxu0 0.0
        %808 = vmatprep.subr.mxu0 0.0
        %809 = vmatpush2.xpose.msra.mxu0 0.0
        %810 = vmatprep.mubr.f32.mxu0 0.0
        %811 = vmatmul.mubr.f32.gmra.mxu0 %v741
        %v812 = vpop.f32.mrf.mxu0
        %v813 = vadd.f32 0.0, %v812
        %v814 = vpop.f32.mrf.mxu0
        %815 = vdwg.mxu0
        %vm816 = vcmask 64512
        %v817 = vsel %vm816, %v737, -inf
        %818 = vmax.xlane.f32.xlu0 %v817
        %v819 = vpop.xlane.xlu0 %818
        %v820 = vsel %vm816, %v813, -inf
        %821 = vmax.xlane.f32.xlu0 %v820
        %v822 = vpop.xlane.xlu0 %821
        %v823 = vsub.f32 %v737, %v819
        %v824 = vsub.f32 %v813, %v822
        %v825 = vmul.f32 %v823, 1.442695
        %v826 = vpow.pop %v825
        %v827 = vmul.f32 %v824, 1.442695
        %v828 = vpow.pop %v827
        %v829 = vsel %vm816, %v826, 0.0
        %830 = vadd.xlane.f32.xlu0 %v829
        %v831 = vpop.xlane.xlu0 %830
        %v832 = vsel %vm816, %v828, 0.0
        %833 = vadd.xlane.f32.xlu0 %v832
        %v834 = vpop.xlane.xlu0 %833
        %v835 = vrcp.pop %v831
        %v836 = vrcp.pop %v834
        %v837 = vmul.f32 %v826, %v835
        %v838 = vmul.f32 %v828, %v836
        %v840 = vsel %vm816, %v837, 0
        %842 = vmatprep.subr.mxu0 0.0
        %843 = vmatpush1.msra.mxu0 0.0
        %844 = vmatprep.subr.mxu0 0.0
        %845 = vmatpush1.msra.mxu0 0.0
        %846 = vmatprep.subr.mxu0 0.0
        %847 = vmatpush1.msra.mxu0 0.0
        %848 = vmatprep.subr.mxu0 0.0
        %849 = vmatpush1.msra.mxu0 0.0
        %850 = vmatprep.subr.mxu0 0.0
        %851 = vmatpush1.msra.mxu0 0.0
        %852 = vmatprep.subr.mxu0 0.0
        %853 = vmatpush1.msra.mxu0 0.0
        %854 = vmatprep.subr.mxu0 0.0
        %855 = vmatpush1.msra.mxu0 0.0
        %856 = vmatprep.subr.mxu0 0.0
        %857 = vmatpush1.msra.mxu0 0.0
        %858 = vmatprep.subr.mxu0 0.0
        %859 = vmatpush1.msra.mxu0 0.0
        %860 = vmatprep.subr.mxu0 0.0
        %861 = vmatpush1.msra.mxu0 0.0
        %862 = vmatprep.subr.mxu0 0.0
        %863 = vmatpush1.msra.mxu0 0.0
        %864 = vmatprep.subr.mxu0 0.0
        %865 = vmatpush1.msra.mxu0 0.0
        %866 = vmatprep.subr.mxu0 0.0
        %867 = vmatpush1.msra.mxu0 0.0
        %868 = vmatprep.subr.mxu0 0.0
        %869 = vmatpush1.msra.mxu0 0.0
        %870 = vmatprep.subr.mxu0 0.0
        %871 = vmatpush1.msra.mxu0 0.0
        %872 = vmatprep.subr.mxu0 0.0
        %873 = vmatpush1.msra.mxu0 %v653
        %874 = vmatprep.subr.mxu0 0.0
        %875 = vmatpush2.msra.mxu0 0.0
        %876 = vmatprep.subr.mxu0 0.0
        %877 = vmatpush2.msra.mxu0 0.0
        %878 = vmatprep.subr.mxu0 0.0
        %879 = vmatpush2.msra.mxu0 0.0
        %880 = vmatprep.subr.mxu0 0.0
        %881 = vmatpush2.msra.mxu0 0.0
        %882 = vmatprep.subr.mxu0 0.0
        %883 = vmatpush2.msra.mxu0 0.0
        %884 = vmatprep.subr.mxu0 0.0
        %885 = vmatpush2.msra.mxu0 0.0
        %886 = vmatprep.subr.mxu0 0.0
        %887 = vmatpush2.msra.mxu0 0.0
        %888 = vmatprep.subr.mxu0 0.0
        %889 = vmatpush2.msra.mxu0 0.0
        %890 = vmatprep.subr.mxu0 0.0
        %891 = vmatpush2.msra.mxu0 0.0
        %892 = vmatprep.subr.mxu0 0.0
        %893 = vmatpush2.msra.mxu0 0.0
        %894 = vmatprep.subr.mxu0 0.0
        %895 = vmatpush2.msra.mxu0 0.0
        %896 = vmatprep.subr.mxu0 0.0
        %897 = vmatpush2.msra.mxu0 0.0
        %898 = vmatprep.subr.mxu0 0.0
        %899 = vmatpush2.msra.mxu0 0.0
        %900 = vmatprep.subr.mxu0 0.0
        %901 = vmatpush2.msra.mxu0 0.0
        %902 = vmatprep.subr.mxu0 0.0
        %903 = vmatpush2.msra.mxu0 0.0
        %904 = vmatprep.subr.mxu0 0.0
        %905 = vmatpush2.msra.mxu0 0.0
        %906 = vmatprep.mubr.f32.mxu0 0.0
        %907 = vmatmul.mubr.f32.gmra.mxu0 %v840
        %v908 = vpop.f32.mrf.mxu0
        %v909 = vadd.f32 0.0, %v908
        %v910 = vpop.f32.mrf.mxu0
        %911 = vdwg.mxu0
        %v913 = vsel %vm816, %v838, 0
        %915 = vmatprep.subr.mxu0 0.0
        %916 = vmatpush1.msra.mxu0 0.0
        %917 = vmatprep.subr.mxu0 0.0
        %918 = vmatpush1.msra.mxu0 0.0
        %919 = vmatprep.subr.mxu0 0.0
        %920 = vmatpush1.msra.mxu0 0.0
        %921 = vmatprep.subr.mxu0 0.0
        %922 = vmatpush1.msra.mxu0 0.0
        %923 = vmatprep.subr.mxu0 0.0
        %924 = vmatpush1.msra.mxu0 0.0
        %925 = vmatprep.subr.mxu0 0.0
        %926 = vmatpush1.msra.mxu0 0.0
        %927 = vmatprep.subr.mxu0 0.0
        %928 = vmatpush1.msra.mxu0 0.0
        %929 = vmatprep.subr.mxu0 0.0
        %930 = vmatpush1.msra.mxu0 0.0
        %931 = vmatprep.subr.mxu0 0.0
        %932 = vmatpush1.msra.mxu0 0.0
        %933 = vmatprep.subr.mxu0 0.0
        %934 = vmatpush1.msra.mxu0 0.0
        %935 = vmatprep.subr.mxu0 0.0
        %936 = vmatpush1.msra.mxu0 0.0
        %937 = vmatprep.subr.mxu0 0.0
        %938 = vmatpush1.msra.mxu0 0.0
        %939 = vmatprep.subr.mxu0 0.0
        %940 = vmatpush1.msra.mxu0 0.0
        %941 = vmatprep.subr.mxu0 0.0
        %942 = vmatpush1.msra.mxu0 0.0
        %943 = vmatprep.subr.mxu0 0.0
        %944 = vmatpush1.msra.mxu0 0.0
        %945 = vmatprep.subr.mxu0 0.0
        %946 = vmatpush1.msra.mxu0 %v658
        %947 = vmatprep.subr.mxu0 0.0
        %948 = vmatpush2.msra.mxu0 0.0
        %949 = vmatprep.subr.mxu0 0.0
        %950 = vmatpush2.msra.mxu0 0.0
        %951 = vmatprep.subr.mxu0 0.0
        %952 = vmatpush2.msra.mxu0 0.0
        %953 = vmatprep.subr.mxu0 0.0
        %954 = vmatpush2.msra.mxu0 0.0
        %955 = vmatprep.subr.mxu0 0.0
        %956 = vmatpush2.msra.mxu0 0.0
        %957 = vmatprep.subr.mxu0 0.0
        %958 = vmatpush2.msra.mxu0 0.0
        %959 = vmatprep.subr.mxu0 0.0
        %960 = vmatpush2.msra.mxu0 0.0
        %961 = vmatprep.subr.mxu0 0.0
        %962 = vmatpush2.msra.mxu0 0.0
        %963 = vmatprep.subr.mxu0 0.0
        %964 = vmatpush2.msra.mxu0 0.0
        %965 = vmatprep.subr.mxu0 0.0
        %966 = vmatpush2.msra.mxu0 0.0
        %967 = vmatprep.subr.mxu0 0.0
        %968 = vmatpush2.msra.mxu0 0.0
        %969 = vmatprep.subr.mxu0 0.0
        %970 = vmatpush2.msra.mxu0 0.0
        %971 = vmatprep.subr.mxu0 0.0
        %972 = vmatpush2.msra.mxu0 0.0
        %973 = vmatprep.subr.mxu0 0.0
        %974 = vmatpush2.msra.mxu0 0.0
        %975 = vmatprep.subr.mxu0 0.0
        %976 = vmatpush2.msra.mxu0 0.0
        %977 = vmatprep.subr.mxu0 0.0
        %978 = vmatpush2.msra.mxu0 0.0
        %979 = vmatprep.mubr.f32.mxu0 0.0
        %980 = vmatmul.mubr.f32.gmra.mxu0 %v913
        %v981 = vpop.f32.mrf.mxu0
        %v982 = vadd.f32 0.0, %v981
        %v983 = vpop.f32.mrf.mxu0
        %984 = vdwg.mxu0
        %985 = vst.msk [vmem:[%s358] sm:$0xff] %vm663, %v909
        %986 = vst.msk [vmem:[%s358 + $0x8] sm:$0xff] %vm663, %v982
        %s987 = sand.u32 %s235, 1
        %s988 = scalar_lea.sflag [#allocation3], %s987
        %s989 = sand.u32 %s235, 1
        %s990 = smul.addr %s989, 16
        %s991 = scalar_lea.vmem [#allocation2], %s990
        // Predicated region
        $region57: #{tpu_custom_call.1} parent=55 // pred_check
          %p992 = pneg %p245
        $region58: #{tpu_custom_call.1} parent=55 // pred_check_branch
          %994 = sbr.rel (%p992) target = $region60
        $region59: #{tpu_custom_call.1} parent=55 // pred_region
          %s995 = smul.u32 2, %s23
          %s997 = ssub.s32 256, 256
          %998 = vsyncadd %s988, %s997
          %s999 = smul.addr %s995, 128
          %s1000 = scalar_lea.hbm %s9, %s999
          %s1001 = sshll.u32 %s991, 4
          %s1002 = int_to_ptr.vmem [resolvable:$true] %s1001
          %1007 = dma.vmem_to_hbm [thread:$0]  %s1002, 256, %s1000, %s988, 128, 128, 8
        $region60: #{tpu_custom_call.1} parent=55 // pred_fallthru
          _
      $region56: #{tpu_custom_call.1} parent=5 // pred_fallthru
        _
      %p1008 = scmp.le.s32.totalorder 2, %s18
      // Predicated region
      $region61: #{tpu_custom_call.1} parent=5 // pred_check
        %p1009 = pneg %p1008
      $region62: #{tpu_custom_call.1} parent=5 // pred_check_branch
        %1011 = sbr.rel (%p1009) target = $region64
      $region63: #{tpu_custom_call.1} parent=5 // pred_region
        %s1012 = ssub.s32 %s18, 2
        // Predicated region
        $region65: #{tpu_custom_call.1} parent=63 // pred_check
          %p1013 = pneg %p251
        $region66: #{tpu_custom_call.1} parent=63 // pred_check_branch
          %1015 = sbr.rel (%p1013) target = $region68
        $region67: #{tpu_custom_call.1} parent=63 // pred_region
          %s1016 = sand.u32 %s236, 1
          %s1017 = scalar_lea.sflag [#allocation3], %s1016
          %s1018 = sand.u32 %s236, 1
          %s1019 = smul.addr %s1018, 16
          %s1020 = scalar_lea.vmem [#allocation2], %s1019
          %1021 = dma.done %s1017, 256
        $region68: #{tpu_custom_call.1} parent=63 // pred_fallthru
          _
      $region64: #{tpu_custom_call.1} parent=5 // pred_fallthru
        _
    $region6: #{tpu_custom_call.1} parent=1 // loop_footer
      %s22 = sadd.s32 1, %s18
    $region7: #{tpu_custom_call.1} parent=1 // loop_footer_branch
      %17 = sbr.rel target = $region3
    $region8: #{tpu_custom_call.1} parent=1 // loop_exit
      _
    %1022 = vsyncpa [#allocation3], 1
    %s1023 = scalar_lea.sflag [#allocation3], 1
    %1024 = vsyncpa %s1023, 1

</llo_original>
